<compile_context>
chip_gen: v7x
topology: tpu7x:2x2x1
jax: 0.10.0
libtpu: 0.0.40
codegen_flags: <defaults>
</compile_context>

<pallas_src>
import math

import jax
import jax.numpy as jnp
from jax.experimental import pallas as pl
from jax.experimental.pallas import tpu as pltpu


def _paddings(conv_gram_num):
    # padding = ceil((n - 1) / 2) for kernel size n = k + 1.
    return [int(math.ceil(((k + 1) - 1) / 2.0)) for k in range(conv_gram_num)]


def _weight_offsets(conv_gram_num):
    offs, off = [], 0
    for k in range(conv_gram_num):
        offs.append(off)
        off += (k + 1) ** 2
    return offs, off


def _make_kernel(conv_gram_num, TB, S, E):
    pads = _paddings(conv_gram_num)
    pmax = max(pads)
    woff, _ = _weight_offsets(conv_gram_num)

    def shift_seq(v, d):
        # y[:, s, :] = v[:, s + d, :], zero outside [0, S).
        if d == 0:
            return v
        z = jnp.zeros((TB, abs(d), E), jnp.float32)
        if d > 0:
            return jnp.concatenate([v[:, d:, :], z], axis=1)
        return jnp.concatenate([z, v[:, :S + d, :]], axis=1)

    def shift_emb(v, d):
        # y[:, :, e] = v[:, :, e + d], zero outside [0, E).
        if d == 0:
            return v
        z = jnp.zeros((TB, S, abs(d)), jnp.float32)
        if d > 0:
            return jnp.concatenate([v[:, :, d:], z], axis=2)
        return jnp.concatenate([z, v[:, :, :E + d]], axis=2)

    def kernel(w_ref, b_ref, x_ref, scale_ref, out_ref):
        # w_ref:     (sum n^2,) f32 SMEM  -- flattened conv weights (row major)
        # b_ref:     (G,)       f32 SMEM  -- conv biases
        # x_ref:     (TB, S, E) f32 VMEM  -- native layout batch block
        # scale_ref: (TB, S, E) f32 VMEM  -- dropout scale, entries in {0, 2}
        # out_ref:   (TB, E)    f32 VMEM
        x = x_ref[...]

        accs = [None] * conv_gram_num
        # Enumerate distinct (seq, embed) tap offsets once; every conv whose
        # kernel covers that offset reuses the same shifted tensor.
        # TODO(synk): on hardware, pltpu.roll + an iota mask would move these
        # shifts onto the otherwise-idle XLU slot; value slice+concat is kept
        # here for interpret-mode portability.
        for dc in range(-pmax, pmax + 1):          # shift along seq   (axis 1)
            x_seq = None
            for da in range(-pmax, pmax + 1):      # shift along embed (axis 2)
                users = []
                for k in range(conv_gram_num):
                    n, p = k + 1, pads[k]
                    a, c = da + p, dc + p          # kernel row (embed), col (seq)
                    if 0 <= a < n and 0 <= c < n:
                        users.append((k, a, c, n))
                if not users:
                    continue
                if x_seq is None:
                    x_seq = shift_seq(x, dc)
                shifted = shift_emb(x_seq, da)
                for k, a, c, n in users:
                    w = w_ref[woff[k] + a * n + c]     # scalar read from SMEM
                    contrib = w * shifted
                    accs[k] = contrib if accs[k] is None else accs[k] + contrib

        # torch.cat + max over the G conv outputs (bias added per conv first).
        maxed = accs[0] + b_ref[0]
        for k in range(1, conv_gram_num):
            maxed = jnp.maximum(maxed, accs[k] + b_ref[k])

        y = jnp.tanh(maxed)
        # F.dropout default (p=0.5, training=True): scale holds 0 or 2.
        y = y * scale_ref[...]
        # Final max over the seq axis -> (TB, E), lane-dense along embed.
        out_ref[...] = jnp.max(y, axis=1)

    return kernel


def _pick_tb(batch, cap=64):
    """Batch tile per grid step.

    Whole batch if small; otherwise the largest multiple-of-8 divisor <= cap so
    the (TB, E) output block satisfies the (8, 128) tiling rule and the
    double-buffered (TB, S, E) input block stays far below the scoped VMEM
    limit on all generations (16/32/32 MiB default on v5e/v6e/v7x).
    """
    if batch <= cap:
        return batch
    best = 0
    for tb in range(8, cap + 1, 8):
        if batch % tb == 0:
            best = tb
    return best if best else batch


def conv_embed_forward(x, w_flat, bias, drop_scale, conv_gram_num):
    """x: (B, S, E) f32, drop_scale: (B, S, E) f32 in {0, 2} -> (B, E) f32."""
    B, S, E = x.shape
    TB = _pick_tb(B)
    assert B % TB == 0
    kernel = _make_kernel(conv_gram_num, TB, S, E)

    return pl.pallas_call(
        kernel,
        out_shape=jax.ShapeDtypeStruct((B, E), jnp.float32),
        grid=(B // TB,),
        in_specs=[
            pl.BlockSpec(memory_space=pltpu.MemorySpace.SMEM),    # w_flat
            pl.BlockSpec(memory_space=pltpu.MemorySpace.SMEM),    # bias
            pl.BlockSpec((TB, S, E), lambda i: (i, 0, 0)),        # x
            pl.BlockSpec((TB, S, E), lambda i: (i, 0, 0)),        # dropout scale
        ],
        out_specs=pl.BlockSpec((TB, E), lambda i: (i, 0)),
        compiler_params=pltpu.CompilerParams(
            dimension_semantics=("parallel",)),
    )(w_flat, bias, x.astype(jnp.float32), drop_scale.astype(jnp.float32))


def init_params(conv_gram_num, key):
    """Synthetic init matching the module's parameter shapes.

    Conv2d(1, 1, n): weight (n, n) xavier_normal, bias default
    uniform(-1/sqrt(fan_in), 1/sqrt(fan_in)).
    """
    weights, biases = [], []
    for k in range(conv_gram_num):
        n = k + 1
        key, kw, kb = jax.random.split(key, 3)
        std = math.sqrt(2.0 / (n * n + n * n))
        w = std * jax.random.normal(kw, (n, n), jnp.float32)
        bound = 1.0 / math.sqrt(n * n)
        b = jax.random.uniform(kb, (), jnp.float32, -bound, bound)
        weights.append(w)
        biases.append(b)
    w_flat = jnp.concatenate([w.reshape(-1) for w in weights])
    b_arr = jnp.stack(biases)
    return weights, biases, w_flat, b_arr


def reference_forward(x, weights, biases, drop_scale, conv_gram_num):
    """Pure-JAX replica of the torch forward (uses the same dropout mask)."""
    B, S, E = x.shape
    img = jnp.transpose(x, (0, 2, 1))[:, None, :, :]          # (B,1,E,S) NCHW
    pads = _paddings(conv_gram_num)
    outs = []
    for k in range(conv_gram_num):
        n, p = k + 1, pads[k]
        w = weights[k].reshape(1, 1, n, n)
        c = jax.lax.conv_general_dilated(
            img, w, window_strides=(1, 1), padding=[(p, p), (p, p)],
            dimension_numbers=("NCHW", "OIHW", "NCHW"))
        outs.append(c[:, :, :E, :S] + biases[k])               # crop like torch
    m = jnp.max(jnp.concatenate(outs, axis=1), axis=1)         # (B, E, S)
    y = jnp.tanh(m) * jnp.transpose(drop_scale, (0, 2, 1))     # dropout
    return jnp.max(y, axis=2)                                  # (B, E)


if __name__ == "__main__":
    conv_gram_num = 3
    B, S, E = 2, 8, 32          # batch, seq_length, embed_size

    key = jax.random.PRNGKey(0)
    kx, kp, kd = jax.random.split(key, 3)
    x = jax.random.normal(kx, (B, S, E), dtype=jnp.float32)
    weights, biases, w_flat, b_arr = init_params(conv_gram_num, kp)

    # F.dropout(p=0.5, training=True): keep w.p. 0.5, scale kept values by 2.
    # TODO(synk): mask distribution matches torch dropout, not torch's RNG stream.
    drop_scale = 2.0 * jax.random.bernoulli(kd, 0.5, (B, S, E)).astype(jnp.float32)

    out = conv_embed_forward(x, w_flat, b_arr, drop_scale, conv_gram_num)
    out = jax.block_until_ready(out)
    assert out.shape == (B, E) and out.dtype == jnp.float32

    ref = reference_forward(x, weights, biases, drop_scale, conv_gram_num)
    assert jnp.allclose(out, ref, atol=1e-4, rtol=1e-4), (
        "max abs err = %f" % float(jnp.max(jnp.abs(out - ref))))

    print("KERNEL_OK")
</pallas_src>

<mosaic_0001>
module attributes {stable_mosaic.version = 11 : i64} {
  func.func @kernel(%arg0: i32, %arg1: memref<14xf32, #tpu.memory_space<smem>>, %arg2: memref<3xf32, #tpu.memory_space<smem>>, %arg3: memref<2x8x32xf32, #tpu.memory_space<vmem>>, %arg4: memref<2x8x32xf32, #tpu.memory_space<vmem>>, %arg5: memref<2x32xf32, #tpu.memory_space<vmem>>) attributes {dimension_semantics = [#tpu.dimension_semantics<parallel>], iteration_bounds = array<i64: 1>, scalar_prefetch = 0 : i64, scratch_operands = 0 : i64, tpu.core_type = #tpu.core_type<tc>, window_params = [{transform_indices = @transform_0, window_bounds = array<i64: 14>}, {transform_indices = @transform_1, window_bounds = array<i64: 3>}, {transform_indices = @transform_2, window_bounds = array<i64: 2, 8, 32>}, {transform_indices = @transform_3, window_bounds = array<i64: 2, 8, 32>}, {transform_indices = @transform_4, window_bounds = array<i64: 2, 32>}]} {
    %c0 = arith.constant 0 : index
    %c0_0 = arith.constant 0 : index
    %c0_1 = arith.constant 0 : index
    %0 = vector.load %arg3[%c0, %c0_0, %c0_1] : memref<2x8x32xf32, #tpu.memory_space<vmem>>, vector<2x8x32xf32>
    %cst = arith.constant 0.000000e+00 : f32
    %1 = vector.broadcast %cst : f32 to vector<2x1x32xf32>
    %2 = vector.extract_strided_slice %0 {offsets = [0, 0, 0], sizes = [2, 7, 32], strides = [1, 1, 1]} : vector<2x8x32xf32> to vector<2x7x32xf32>
    %3 = tpu.concatenate %1, %2 in 1 : vector<2x1x32xf32>, vector<2x7x32xf32> -> vector<2x8x32xf32>
    %cst_2 = arith.constant 0.000000e+00 : f32
    %4 = vector.broadcast %cst_2 : f32 to vector<2x8x1xf32>
    %5 = vector.extract_strided_slice %3 {offsets = [0, 0, 0], sizes = [2, 8, 31], strides = [1, 1, 1]} : vector<2x8x32xf32> to vector<2x8x31xf32>
    %6 = tpu.concatenate %4, %5 in 2 : vector<2x8x1xf32>, vector<2x8x31xf32> -> vector<2x8x32xf32>
    %c1 = arith.constant 1 : index
    %7 = memref.load %arg1[%c1] : memref<14xf32, #tpu.memory_space<smem>>
    %8 = vector.broadcast %7 : f32 to vector<2x8x32xf32>
    %9 = arith.mulf %8, %6 : vector<2x8x32xf32>
    %c5 = arith.constant 5 : index
    %10 = memref.load %arg1[%c5] : memref<14xf32, #tpu.memory_space<smem>>
    %11 = vector.broadcast %10 : f32 to vector<2x8x32xf32>
    %12 = arith.mulf %11, %6 : vector<2x8x32xf32>
    %c3 = arith.constant 3 : index
    %13 = memref.load %arg1[%c3] : memref<14xf32, #tpu.memory_space<smem>>
    %14 = vector.broadcast %13 : f32 to vector<2x8x32xf32>
    %15 = arith.mulf %14, %3 : vector<2x8x32xf32>
    %16 = arith.addf %9, %15 : vector<2x8x32xf32>
    %c8 = arith.constant 8 : index
    %17 = memref.load %arg1[%c8] : memref<14xf32, #tpu.memory_space<smem>>
    %18 = vector.broadcast %17 : f32 to vector<2x8x32xf32>
    %19 = arith.mulf %18, %3 : vector<2x8x32xf32>
    %20 = arith.addf %12, %19 : vector<2x8x32xf32>
    %cst_3 = arith.constant 0.000000e+00 : f32
    %21 = vector.broadcast %cst_3 : f32 to vector<2x8x1xf32>
    %22 = vector.extract_strided_slice %3 {offsets = [0, 0, 1], sizes = [2, 8, 31], strides = [1, 1, 1]} : vector<2x8x32xf32> to vector<2x8x31xf32>
    %23 = tpu.concatenate %22, %21 in 2 : vector<2x8x31xf32>, vector<2x8x1xf32> -> vector<2x8x32xf32>
    %c11 = arith.constant 11 : index
    %24 = memref.load %arg1[%c11] : memref<14xf32, #tpu.memory_space<smem>>
    %25 = vector.broadcast %24 : f32 to vector<2x8x32xf32>
    %26 = arith.mulf %25, %23 : vector<2x8x32xf32>
    %27 = arith.addf %20, %26 : vector<2x8x32xf32>
    %cst_4 = arith.constant 0.000000e+00 : f32
    %28 = vector.broadcast %cst_4 : f32 to vector<2x8x1xf32>
    %29 = vector.extract_strided_slice %0 {offsets = [0, 0, 0], sizes = [2, 8, 31], strides = [1, 1, 1]} : vector<2x8x32xf32> to vector<2x8x31xf32>
    %30 = tpu.concatenate %28, %29 in 2 : vector<2x8x1xf32>, vector<2x8x31xf32> -> vector<2x8x32xf32>
    %c2 = arith.constant 2 : index
    %31 = memref.load %arg1[%c2] : memref<14xf32, #tpu.memory_space<smem>>
    %32 = vector.broadcast %31 : f32 to vector<2x8x32xf32>
    %33 = arith.mulf %32, %30 : vector<2x8x32xf32>
    %34 = arith.addf %16, %33 : vector<2x8x32xf32>
    %c6 = arith.constant 6 : index
    %35 = memref.load %arg1[%c6] : memref<14xf32, #tpu.memory_space<smem>>
    %36 = vector.broadcast %35 : f32 to vector<2x8x32xf32>
    %37 = arith.mulf %36, %30 : vector<2x8x32xf32>
    %38 = arith.addf %27, %37 : vector<2x8x32xf32>
    %c0_5 = arith.constant 0 : index
    %39 = memref.load %arg1[%c0_5] : memref<14xf32, #tpu.memory_space<smem>>
    %40 = vector.broadcast %39 : f32 to vector<2x8x32xf32>
    %41 = arith.mulf %40, %0 : vector<2x8x32xf32>
    %c4 = arith.constant 4 : index
    %42 = memref.load %arg1[%c4] : memref<14xf32, #tpu.memory_space<smem>>
    %43 = vector.broadcast %42 : f32 to vector<2x8x32xf32>
    %44 = arith.mulf %43, %0 : vector<2x8x32xf32>
    %45 = arith.addf %34, %44 : vector<2x8x32xf32>
    %c9 = arith.constant 9 : index
    %46 = memref.load %arg1[%c9] : memref<14xf32, #tpu.memory_space<smem>>
    %47 = vector.broadcast %46 : f32 to vector<2x8x32xf32>
    %48 = arith.mulf %47, %0 : vector<2x8x32xf32>
    %49 = arith.addf %38, %48 : vector<2x8x32xf32>
    %cst_6 = arith.constant 0.000000e+00 : f32
    %50 = vector.broadcast %cst_6 : f32 to vector<2x8x1xf32>
    %51 = vector.extract_strided_slice %0 {offsets = [0, 0, 1], sizes = [2, 8, 31], strides = [1, 1, 1]} : vector<2x8x32xf32> to vector<2x8x31xf32>
    %52 = tpu.concatenate %51, %50 in 2 : vector<2x8x31xf32>, vector<2x8x1xf32> -> vector<2x8x32xf32>
    %c12 = arith.constant 12 : index
    %53 = memref.load %arg1[%c12] : memref<14xf32, #tpu.memory_space<smem>>
    %54 = vector.broadcast %53 : f32 to vector<2x8x32xf32>
    %55 = arith.mulf %54, %52 : vector<2x8x32xf32>
    %56 = arith.addf %49, %55 : vector<2x8x32xf32>
    %cst_7 = arith.constant 0.000000e+00 : f32
    %57 = vector.broadcast %cst_7 : f32 to vector<2x1x32xf32>
    %58 = vector.extract_strided_slice %0 {offsets = [0, 1, 0], sizes = [2, 7, 32], strides = [1, 1, 1]} : vector<2x8x32xf32> to vector<2x7x32xf32>
    %59 = tpu.concatenate %58, %57 in 1 : vector<2x7x32xf32>, vector<2x1x32xf32> -> vector<2x8x32xf32>
    %cst_8 = arith.constant 0.000000e+00 : f32
    %60 = vector.broadcast %cst_8 : f32 to vector<2x8x1xf32>
    %61 = vector.extract_strided_slice %59 {offsets = [0, 0, 0], sizes = [2, 8, 31], strides = [1, 1, 1]} : vector<2x8x32xf32> to vector<2x8x31xf32>
    %62 = tpu.concatenate %60, %61 in 2 : vector<2x8x1xf32>, vector<2x8x31xf32> -> vector<2x8x32xf32>
    %c7 = arith.constant 7 : index
    %63 = memref.load %arg1[%c7] : memref<14xf32, #tpu.memory_space<smem>>
    %64 = vector.broadcast %63 : f32 to vector<2x8x32xf32>
    %65 = arith.mulf %64, %62 : vector<2x8x32xf32>
    %66 = arith.addf %56, %65 : vector<2x8x32xf32>
    %c10 = arith.constant 10 : index
    %67 = memref.load %arg1[%c10] : memref<14xf32, #tpu.memory_space<smem>>
    %68 = vector.broadcast %67 : f32 to vector<2x8x32xf32>
    %69 = arith.mulf %68, %59 : vector<2x8x32xf32>
    %70 = arith.addf %66, %69 : vector<2x8x32xf32>
    %cst_9 = arith.constant 0.000000e+00 : f32
    %71 = vector.broadcast %cst_9 : f32 to vector<2x8x1xf32>
    %72 = vector.extract_strided_slice %59 {offsets = [0, 0, 1], sizes = [2, 8, 31], strides = [1, 1, 1]} : vector<2x8x32xf32> to vector<2x8x31xf32>
    %73 = tpu.concatenate %72, %71 in 2 : vector<2x8x31xf32>, vector<2x8x1xf32> -> vector<2x8x32xf32>
    %c13 = arith.constant 13 : index
    %74 = memref.load %arg1[%c13] : memref<14xf32, #tpu.memory_space<smem>>
    %75 = vector.broadcast %74 : f32 to vector<2x8x32xf32>
    %76 = arith.mulf %75, %73 : vector<2x8x32xf32>
    %77 = arith.addf %70, %76 : vector<2x8x32xf32>
    %c0_10 = arith.constant 0 : index
    %78 = memref.load %arg2[%c0_10] : memref<3xf32, #tpu.memory_space<smem>>
    %79 = vector.broadcast %78 : f32 to vector<2x8x32xf32>
    %80 = arith.addf %41, %79 : vector<2x8x32xf32>
    %c1_11 = arith.constant 1 : index
    %81 = memref.load %arg2[%c1_11] : memref<3xf32, #tpu.memory_space<smem>>
    %82 = vector.broadcast %81 : f32 to vector<2x8x32xf32>
    %83 = arith.addf %45, %82 : vector<2x8x32xf32>
    %84 = arith.maximumf %80, %83 : vector<2x8x32xf32>
    %c2_12 = arith.constant 2 : index
    %85 = memref.load %arg2[%c2_12] : memref<3xf32, #tpu.memory_space<smem>>
    %86 = vector.broadcast %85 : f32 to vector<2x8x32xf32>
    %87 = arith.addf %77, %86 : vector<2x8x32xf32>
    %88 = arith.maximumf %84, %87 : vector<2x8x32xf32>
    %89 = math.tanh %88 : vector<2x8x32xf32>
    %c0_13 = arith.constant 0 : index
    %c0_14 = arith.constant 0 : index
    %c0_15 = arith.constant 0 : index
    %90 = vector.load %arg4[%c0_13, %c0_14, %c0_15] : memref<2x8x32xf32, #tpu.memory_space<vmem>>, vector<2x8x32xf32>
    %91 = arith.mulf %89, %90 : vector<2x8x32xf32>
    %cst_16 = arith.constant dense<0xFF800000> : vector<2x32xf32>
    %92 = vector.multi_reduction <maximumf>, %91, %cst_16 [1] : vector<2x8x32xf32> to vector<2x32xf32>
    %c0_17 = arith.constant 0 : index
    %c0_18 = arith.constant 0 : index
    %93 = vector.load %arg5[%c0_17, %c0_18] : memref<2x32xf32, #tpu.memory_space<vmem>>, vector<2x32xf32>
    tpu.vector_store %arg5[%c0_17, %c0_18], %92 {strides = array<i32>} : memref<2x32xf32, #tpu.memory_space<vmem>>, vector<2x32xf32>,
    return
  }
  func.func @transform_0(%arg0: i32) -> i32 {
    %c0_i32 = arith.constant 0 : i32
    %c0_i32_0 = arith.constant 0 : i32
    return %c0_i32 : i32
  }
  func.func @transform_1(%arg0: i32) -> i32 {
    %c0_i32 = arith.constant 0 : i32
    %c0_i32_0 = arith.constant 0 : i32
    return %c0_i32 : i32
  }
  func.func @transform_2(%arg0: i32) -> (i32, i32, i32) {
    %c0_i32 = arith.constant 0 : i32
    %c0_i32_0 = arith.constant 0 : i32
    %c0_i32_1 = arith.constant 0 : i32
    return %arg0, %c0_i32, %c0_i32_0 : i32, i32, i32
  }
  func.func @transform_3(%arg0: i32) -> (i32, i32, i32) {
    %c0_i32 = arith.constant 0 : i32
    %c0_i32_0 = arith.constant 0 : i32
    %c0_i32_1 = arith.constant 0 : i32
    return %arg0, %c0_i32, %c0_i32_0 : i32, i32, i32
  }
  func.func @transform_4(%arg0: i32) -> (i32, i32) {
    %c0_i32 = arith.constant 0 : i32
    %c0_i32_0 = arith.constant 0 : i32
    return %arg0, %c0_i32 : i32, i32
  }
}

</mosaic_0001>

<llo_original>
// kernel: tpu_custom_call.1
$region0: #{tpu_custom_call.1}
  #allocation0 [shape = 'u32[]', space=smem, size = 0x4, offset = 0x4, fixed_abs, tag = 'smem constant byte address 0x4 - core index']
  #allocation1 [shape = 'u32[144,128]{1,0:T(1,128)}', space=vmem, size = 0x12000, scoped, tag = 'internal scratch']
  %s0 = inlined_call_operand.hbm [shape: f32[14], index: 0, kind: input, shape index: {}]
  %s1 = inlined_call_operand.vmem [shape: f32[3], index: 1, kind: input, shape index: {}]
  %s2 = inlined_call_operand.hbm [shape: f32[2,8,32], index: 2, kind: input, shape index: {}]
  %s3 = inlined_call_operand.hbm [shape: f32[2,8,32], index: 3, kind: input, shape index: {}]
  %s4 = inlined_call_operand.hbm [shape: f32[2,32], index: 4, kind: output, shape index: {}]
  %s5 = sld [smem:[#allocation0]]
  $region42: #{tpu_custom_call.1} parent=0
    _
  %s7 = ssub.s32 1, %s5
  %s8 = scalar_select 0, %s7, %s5
  $region1: #{tpu_custom_call.1} parent=0
    #allocation2 [shape = 'u8[512]{0}', space=smem, size = 0x200, scoped, tag = 'input window, operand 0, single buffered']
    #allocation3 [shape = 's32[1]{0}', space=sflag, size = 0x4, scoped, tag = 'scoped memory for tpu_custom_call.1']
    #allocation4 [shape = 's32[1]{0}', space=sflag, size = 0x4, scoped, tag = 'scoped memory for tpu_custom_call.1']
    #allocation5 [shape = 's32[1]{0}', space=sflag, size = 0x4, scoped, tag = 'scoped memory for tpu_custom_call.1']
    #allocation6 [shape = 's32[1]{0}', space=sflag, size = 0x4, scoped, tag = 'scoped memory for tpu_custom_call.1']
    #allocation7 [shape = 'u8[512]{0}', space=smem, size = 0x200, scoped, tag = 'input window, operand 1, single buffered']
    #allocation8 [shape = 'u8[8192]{0}', space=vmem, size = 0x2000, scoped, tag = 'input window, operand 2, single buffered']
    #allocation9 [shape = 'u8[8192]{0}', space=vmem, size = 0x2000, scoped, tag = 'input window, operand 3, single buffered']
    #allocation10 [shape = 's32[1]{0}', space=sflag, size = 0x4, scoped, tag = 'scoped memory for tpu_custom_call.1']
    #allocation11 [shape = 'u8[1024]{0}', space=vmem, size = 0x400, scoped, tag = 'output window, operand 0, single buffered']
    %9 = vsyncpa [#allocation5], 0
    %10 = vsyncpa [#allocation6], 0
    %11 = vsyncpa [#allocation3], 0
    %12 = vsyncpa [#allocation10], 0
    %13 = vsyncpa [#allocation4], 0
    // Predicated region
    $region2: #{tpu_custom_call.1} parent=1 // pred_check
      _
    $region3: #{tpu_custom_call.1} parent=1 // pred_check_branch
      %15 = sbr.rel (0) target = $region5
    $region4: #{tpu_custom_call.1} parent=1 // pred_region
      %s17 = ssub.s32 16, 16
      %18 = vsyncadd [#allocation5], %s17
      %21 = dma.hbm_to_smem %s0, 16, [#allocation2], [#allocation5]
    $region5: #{tpu_custom_call.1} parent=1 // pred_fallthru
      _
    // Predicated region
    $region6: #{tpu_custom_call.1} parent=1 // pred_check
      _
    $region7: #{tpu_custom_call.1} parent=1 // pred_check_branch
      %23 = sbr.rel (0) target = $region9
    $region8: #{tpu_custom_call.1} parent=1 // pred_region
      %s25 = ssub.s32 16, 16
      %26 = vsyncadd [#allocation6], %s25
      %s28 = sshll.u32 %s1, 4
      %s29 = int_to_ptr.vmem [resolvable:$true] %s28
      %31 = dma.vmem_to_smem %s29, 16, [#allocation7], [#allocation6]
    $region9: #{tpu_custom_call.1} parent=1 // pred_fallthru
      _
    // Predicated region
    $region10: #{tpu_custom_call.1} parent=1 // pred_check
      _
    $region11: #{tpu_custom_call.1} parent=1 // pred_check_branch
      %33 = sbr.rel (0) target = $region13
    $region12: #{tpu_custom_call.1} parent=1 // pred_region
      %s35 = ssub.s32 256, 256
      %36 = vsyncadd [#allocation3], %s35
      %s37 = sshll.u32 [#allocation8], 4
      %s38 = int_to_ptr.vmem [resolvable:$true] %s37
      %43 = dma.hbm_to_vmem [thread:$0]  %s2, 256, %s38, [#allocation3], 128, 128, 8
    $region13: #{tpu_custom_call.1} parent=1 // pred_fallthru
      _
    // Predicated region
    $region14: #{tpu_custom_call.1} parent=1 // pred_check
      _
    $region15: #{tpu_custom_call.1} parent=1 // pred_check_branch
      %45 = sbr.rel (0) target = $region17
    $region16: #{tpu_custom_call.1} parent=1 // pred_region
      %s47 = ssub.s32 256, 256
      %48 = vsyncadd [#allocation10], %s47
      %s49 = sshll.u32 [#allocation9], 4
      %s50 = int_to_ptr.vmem [resolvable:$true] %s49
      %55 = dma.hbm_to_vmem [thread:$0]  %s3, 256, %s50, [#allocation10], 128, 128, 8
    $region17: #{tpu_custom_call.1} parent=1 // pred_fallthru
      _
    // Predicated region
    $region18: #{tpu_custom_call.1} parent=1 // pred_check
      _
    $region19: #{tpu_custom_call.1} parent=1 // pred_check_branch
      %57 = sbr.rel (0) target = $region21
    $region20: #{tpu_custom_call.1} parent=1 // pred_region
      %58 = dma.done [#allocation5], 16
    $region21: #{tpu_custom_call.1} parent=1 // pred_fallthru
      _
    // Predicated region
    $region22: #{tpu_custom_call.1} parent=1 // pred_check
      _
    $region23: #{tpu_custom_call.1} parent=1 // pred_check_branch
      %60 = sbr.rel (0) target = $region25
    $region24: #{tpu_custom_call.1} parent=1 // pred_region
      %61 = dma.done [#allocation6], 16
    $region25: #{tpu_custom_call.1} parent=1 // pred_fallthru
      _
    // Predicated region
    $region26: #{tpu_custom_call.1} parent=1 // pred_check
      _
    $region27: #{tpu_custom_call.1} parent=1 // pred_check_branch
      %63 = sbr.rel (0) target = $region29
    $region28: #{tpu_custom_call.1} parent=1 // pred_region
      %64 = dma.done [#allocation3], 256
    $region29: #{tpu_custom_call.1} parent=1 // pred_fallthru
      _
    // Predicated region
    $region30: #{tpu_custom_call.1} parent=1 // pred_check
      _
    $region31: #{tpu_custom_call.1} parent=1 // pred_check_branch
      %66 = sbr.rel (0) target = $region33
    $region32: #{tpu_custom_call.1} parent=1 // pred_region
      %67 = dma.done [#allocation10], 256
    $region33: #{tpu_custom_call.1} parent=1 // pred_fallthru
      _
    %68 = sfence
    %v69 = vld [vmem:[#allocation8] sm:$0xff]
    %v70 = vld [vmem:[#allocation8 + $0x8] sm:$0xff]
    %v73 = vrot.slane %v69, 7
    %v74 = vrot.slane %v70, 7
    %vm77 = vcmask 1040384
    %v78 = vsel %vm77, 0.0, %v73
    %v79 = vsel %vm77, 0.0, %v74
    %82 = vrot.lane.b32.xlu0 %v78, 1
    %v83 = vpop.permute.xlu0 %82
    %84 = vrot.lane.b32.xlu0 %v79, 1
    %v85 = vpop.permute.xlu0 %84
    %vm88 = vcmask 7168
    %v89 = vsel %vm88, 0.0, %v83
    %v90 = vsel %vm88, 0.0, %v85
    %s91 = sld [smem:[#allocation2 + $0x1]]
    %v92 = vstv %s91
    %v93 = vmul.f32 %v92, %v89
    %v94 = vmul.f32 %v92, %v90
    %s95 = sld [smem:[#allocation2 + $0x5]]
    %v96 = vstv %s95
    %v97 = vmul.f32 %v96, %v89
    %v98 = vmul.f32 %v96, %v90
    %s99 = sld [smem:[#allocation2 + $0x3]]
    %v100 = vstv %s99
    %v101 = vmul.f32 %v100, %v78
    %v102 = vmul.f32 %v100, %v79
    %v103 = vadd.f32 %v93, %v101
    %v104 = vadd.f32 %v94, %v102
    %s105 = sld [smem:[#allocation2 + $0x8]]
    %v106 = vstv %s105
    %v107 = vmul.f32 %v106, %v78
    %v108 = vmul.f32 %v106, %v79
    %v109 = vadd.f32 %v97, %v107
    %v110 = vadd.f32 %v98, %v108
    %111 = vrot.lane.b32.xlu0 %v78, 127
    %v112 = vpop.permute.xlu0 %111
    %113 = vrot.lane.b32.xlu0 %v79, 127
    %v114 = vpop.permute.xlu0 %113
    %vm117 = vcmask 252928
    %v118 = vsel %vm117, %v112, 0.0
    %v119 = vsel %vm117, %v114, 0.0
    %s120 = sld [smem:[#allocation2 + $0xb]]
    %v121 = vstv %s120
    %v122 = vmul.f32 %v121, %v118
    %v123 = vmul.f32 %v121, %v119
    %v124 = vadd.f32 %v109, %v122
    %v125 = vadd.f32 %v110, %v123
    %126 = vrot.lane.b32.xlu0 %v69, 1
    %v127 = vpop.permute.xlu0 %126
    %128 = vrot.lane.b32.xlu0 %v70, 1
    %v129 = vpop.permute.xlu0 %128
    %v132 = vsel %vm88, 0.0, %v127
    %v133 = vsel %vm88, 0.0, %v129
    %s134 = sld [smem:[#allocation2 + $0x2]]
    %v135 = vstv %s134
    %v136 = vmul.f32 %v135, %v132
    %v137 = vmul.f32 %v135, %v133
    %v138 = vadd.f32 %v103, %v136
    %v139 = vadd.f32 %v104, %v137
    %s140 = sld [smem:[#allocation2 + $0x6]]
    %v141 = vstv %s140
    %v142 = vmul.f32 %v141, %v132
    %v143 = vmul.f32 %v141, %v133
    %v144 = vadd.f32 %v124, %v142
    %v145 = vadd.f32 %v125, %v143
    %s146 = sld [smem:[#allocation2]]
    %v147 = vstv %s146
    %v148 = vmul.f32 %v147, %v69
    %v149 = vmul.f32 %v147, %v70
    %s150 = sld [smem:[#allocation2 + $0x4]]
    %v151 = vstv %s150
    %v152 = vmul.f32 %v151, %v69
    %v153 = vmul.f32 %v151, %v70
    %v154 = vadd.f32 %v138, %v152
    %v155 = vadd.f32 %v139, %v153
    %s156 = sld [smem:[#allocation2 + $0x9]]
    %v157 = vstv %s156
    %v158 = vmul.f32 %v157, %v69
    %v159 = vmul.f32 %v157, %v70
    %v160 = vadd.f32 %v144, %v158
    %v161 = vadd.f32 %v145, %v159
    %162 = vrot.lane.b32.xlu0 %v69, 127
    %v163 = vpop.permute.xlu0 %162
    %164 = vrot.lane.b32.xlu0 %v70, 127
    %v165 = vpop.permute.xlu0 %164
    %v168 = vsel %vm117, %v163, 0.0
    %v169 = vsel %vm117, %v165, 0.0
    %s170 = sld [smem:[#allocation2 + $0xc]]
    %v171 = vstv %s170
    %v172 = vmul.f32 %v171, %v168
    %v173 = vmul.f32 %v171, %v169
    %v174 = vadd.f32 %v160, %v172
    %v175 = vadd.f32 %v161, %v173
    %v176 = vrot.slane %v69, 1
    %v177 = vrot.slane %v70, 1
    %vm180 = vcmask 1046528
    %v181 = vsel %vm180, %v176, 0.0
    %v182 = vsel %vm180, %v177, 0.0
    %185 = vrot.lane.b32.xlu0 %v181, 1
    %v186 = vpop.permute.xlu0 %185
    %187 = vrot.lane.b32.xlu0 %v182, 1
    %v188 = vpop.permute.xlu0 %187
    %v191 = vsel %vm88, 0.0, %v186
    %v192 = vsel %vm88, 0.0, %v188
    %s193 = sld [smem:[#allocation2 + $0x7]]
    %v194 = vstv %s193
    %v195 = vmul.f32 %v194, %v191
    %v196 = vmul.f32 %v194, %v192
    %v197 = vadd.f32 %v174, %v195
    %v198 = vadd.f32 %v175, %v196
    %s199 = sld [smem:[#allocation2 + $0xa]]
    %v200 = vstv %s199
    %v201 = vmul.f32 %v200, %v181
    %v202 = vmul.f32 %v200, %v182
    %v203 = vadd.f32 %v197, %v201
    %v204 = vadd.f32 %v198, %v202
    %205 = vrot.lane.b32.xlu0 %v181, 127
    %v206 = vpop.permute.xlu0 %205
    %207 = vrot.lane.b32.xlu0 %v182, 127
    %v208 = vpop.permute.xlu0 %207
    %v211 = vsel %vm117, %v206, 0.0
    %v212 = vsel %vm117, %v208, 0.0
    %s213 = sld [smem:[#allocation2 + $0xd]]
    %v214 = vstv %s213
    %v215 = vmul.f32 %v214, %v211
    %v216 = vmul.f32 %v214, %v212
    %v217 = vadd.f32 %v203, %v215
    %v218 = vadd.f32 %v204, %v216
    %s219 = sld [smem:[#allocation7]]
    %v220 = vstv %s219
    %v221 = vadd.f32 %v148, %v220
    %v222 = vadd.f32 %v149, %v220
    %s223 = sld [smem:[#allocation7 + $0x1]]
    %v224 = vstv %s223
    %v225 = vadd.f32 %v154, %v224
    %v226 = vadd.f32 %v155, %v224
    %v227 = vmax.f32 %v221, %v225
    %v228 = vmax.f32 %v222, %v226
    %s229 = sld [smem:[#allocation7 + $0x2]]
    %v230 = vstv %s229
    %v231 = vadd.f32 %v217, %v230
    %v232 = vadd.f32 %v218, %v230
    %v233 = vmax.f32 %v227, %v231
    %v234 = vmax.f32 %v228, %v232
    %v235 = vtanh.pop %v233
    %v236 = vtanh.pop %v234
    %v237 = vld [vmem:[#allocation9] sm:$0xff]
    %v238 = vld [vmem:[#allocation9 + $0x8] sm:$0xff]
    %v239 = vmul.f32 %v235, %v237
    %v240 = vmul.f32 %v236, %v238
    %vm241 = vcmask 261120
    %v242 = vsel %vm241, %v239, -inf
    %v243 = vrot.slane %v242, 4
    %v244 = vmax.f32 %v242, %v243
    %v245 = vrot.slane %v244, 2
    %v246 = vmax.f32 %v244, %v245
    %v247 = vrot.slane %v246, 1
    %v248 = vmax.f32 %v246, %v247
    %v249 = vsel %vm241, %v240, -inf
    %v250 = vrot.slane %v249, 4
    %v251 = vmax.f32 %v249, %v250
    %v252 = vrot.slane %v251, 2
    %v253 = vmax.f32 %v251, %v252
    %v254 = vrot.slane %v253, 1
    %v255 = vmax.f32 %v253, %v254
    %vm258 = vcmask 1041409
    %v259 = vsel %vm258, %v255, %v248
    %vm261 = vcmask 254976
    %262 = vst.msk [vmem:[#allocation11] sm:$0x3] %vm261, %v259
    // Predicated region
    $region34: #{tpu_custom_call.1} parent=1 // pred_check
      _
    $region35: #{tpu_custom_call.1} parent=1 // pred_check_branch
      %264 = sbr.rel (0) target = $region37
    $region36: #{tpu_custom_call.1} parent=1 // pred_region
      %s266 = ssub.s32 32, 32
      %267 = vsyncadd [#allocation4], %s266
      %s269 = sshll.u32 [#allocation11], 4
      %s270 = int_to_ptr.vmem [resolvable:$true] %s269
      %272 = dma.vmem_to_hbm [thread:$0]  %s270, 32, %s4, [#allocation4]
    $region37: #{tpu_custom_call.1} parent=1 // pred_fallthru
      _
    // Predicated region
    $region38: #{tpu_custom_call.1} parent=1 // pred_check
      _
    $region39: #{tpu_custom_call.1} parent=1 // pred_check_branch
      %274 = sbr.rel (0) target = $region41
    $region40: #{tpu_custom_call.1} parent=1 // pred_region
      %275 = dma.done [#allocation4], 32
    $region41: #{tpu_custom_call.1} parent=1 // pred_fallthru
      _
    %276 = vsyncpa [#allocation3], 1
    %277 = vsyncpa [#allocation10], 1
    %278 = vsyncpa [#allocation4], 1
    %279 = vsyncpa [#allocation5], 1
    %280 = vsyncpa [#allocation6], 1

</llo_original>
